<compile_context>
chip_gen: v6e
topology: v6e:2x2x1
jax: 0.10.0
libtpu: 0.0.40
codegen_flags: <defaults>
</compile_context>

<pallas_src>
import functools

import jax
import jax.numpy as jnp
import numpy as np
from jax.experimental import pallas as pl
from jax.experimental.pallas import tpu as pltpu


# ---------------------------------------------------------------------------
# Tiling helpers
# ---------------------------------------------------------------------------
def _pick_tile(full, target, align):
    """Largest tile <= target that divides `full` and is either == full or a
    multiple of `align` (satisfies the TPU (8,128) block constraint)."""
    if full <= target:
        return full
    t = (target // align) * align
    while t >= align:
        if full % t == 0:
            return t
        t -= align
    return full  # fall back to the whole axis (no tiling)


def _choose_tiles(B, N, D, itemsize):
    TB = _pick_tile(B, 8, 8)
    # ~2 MiB seq tile per buffer: enough to sit at the HBM roofline, small
    # enough for v7x's 64 MiB VMEM with double buffering.
    budget = 2 * 1024 * 1024
    tn_target = max(128, budget // max(1, TB * D * itemsize))
    TN = _pick_tile(N, tn_target, 128)
    return TB, TN


# ---------------------------------------------------------------------------
# Kernels
# ---------------------------------------------------------------------------
def _masked_kernel(inv_ref, seq_ref, msk_ref, out_ref, acc_ref):
    """acc += msk_tile @ seq_tile (MXU, f32 acc); scale by 1/sum(msk) at end."""
    k = pl.program_id(1)

    @pl.when(k == 0)
    def _():
        acc_ref[...] = jnp.zeros_like(acc_ref)

    # (TB,1,TN) x (TB,TN,D) -> (TB,1,D): batched contraction over N on the MXU.
    acc_ref[...] += jnp.einsum(
        "bqn,bnd->bqd", msk_ref[...], seq_ref[...],
        preferred_element_type=jnp.float32)

    @pl.when(k == pl.num_programs(1) - 1)
    def _():
        out_ref[...] = (acc_ref[...] * inv_ref[0, 0]).astype(out_ref.dtype)


def _mean_kernel(seq_ref, out_ref, acc_ref, *, inv_n):
    """acc += sum(seq_tile, axis=N) in f32; scale by 1/N at finalize."""
    k = pl.program_id(1)

    @pl.when(k == 0)
    def _():
        acc_ref[...] = jnp.zeros_like(acc_ref)

    acc_ref[...] += jnp.sum(seq_ref[...].astype(jnp.float32), axis=1)

    @pl.when(k == pl.num_programs(1) - 1)
    def _():
        out_ref[...] = (acc_ref[...] * inv_n).astype(out_ref.dtype)


# ---------------------------------------------------------------------------
# Wrappers
# ---------------------------------------------------------------------------
@jax.jit
def _avg_readout_masked(seq, msk3, inv):
    B, N, D = seq.shape
    itemsize = seq.dtype.itemsize
    TB, TN = _choose_tiles(B, N, D, itemsize)
    grid = (B // TB, N // TN)
    cost = pl.CostEstimate(
        flops=2 * B * N * D,
        transcendentals=0,
        bytes_accessed=itemsize * (B * N * D + B * N) + 4 * B * D,
    )
    out = pl.pallas_call(
        _masked_kernel,
        out_shape=jax.ShapeDtypeStruct((B, 1, D), seq.dtype),
        grid=grid,
        in_specs=[
            pl.BlockSpec(memory_space=pltpu.MemorySpace.SMEM),      # inv (1,1)
            pl.BlockSpec((TB, TN, D), lambda b, k: (b, k, 0)),      # seq
            pl.BlockSpec((TB, 1, TN), lambda b, k: (b, 0, k)),      # msk
        ],
        out_specs=pl.BlockSpec((TB, 1, D), lambda b, k: (b, 0, 0)),
        scratch_shapes=[pltpu.VMEM((TB, 1, D), jnp.float32)],
        compiler_params=pltpu.CompilerParams(
            dimension_semantics=("parallel", "arbitrary")),
        cost_estimate=cost,
    )(inv, seq, msk3)
    return out.reshape(B, D)


@jax.jit
def _avg_readout_mean(seq):
    B, N, D = seq.shape
    itemsize = seq.dtype.itemsize
    TB, TN = _choose_tiles(B, N, D, itemsize)
    grid = (B // TB, N // TN)
    cost = pl.CostEstimate(
        flops=B * N * D,
        transcendentals=0,
        bytes_accessed=itemsize * B * N * D + 4 * B * D,
    )
    kernel = functools.partial(_mean_kernel, inv_n=1.0 / N)
    return pl.pallas_call(
        kernel,
        out_shape=jax.ShapeDtypeStruct((B, D), seq.dtype),
        grid=grid,
        in_specs=[pl.BlockSpec((TB, TN, D), lambda b, k: (b, k, 0))],
        out_specs=pl.BlockSpec((TB, D), lambda b, k: (b, 0)),
        scratch_shapes=[pltpu.VMEM((TB, D), jnp.float32)],
        compiler_params=pltpu.CompilerParams(
            dimension_semantics=("parallel", "arbitrary")),
        cost_estimate=cost,
    )(seq)


def avg_readout(seq, msk=None):
    """Pallas equivalent of AvgReadout.forward(seq, msk)."""
    if msk is None:
        return _avg_readout_mean(seq)
    B, N, _ = seq.shape
    # Hoist the global 1/sum(msk) out of the kernel (f32, matches torch).
    inv = (1.0 / jnp.sum(msk.astype(jnp.float32))).reshape(1, 1)
    # Mask travels as (B, 1, N): lane-dense along N (no 128x lane padding).
    msk3 = msk.astype(seq.dtype).reshape(B, 1, N)
    return _avg_readout_masked(seq, msk3, inv)


# ---------------------------------------------------------------------------
# Pure-JAX reference (mirrors the PyTorch forward exactly)
# ---------------------------------------------------------------------------
def reference_avg_readout(seq, msk=None):
    if msk is None:
        return jnp.mean(seq, axis=1)
    msk3 = msk[:, :, None].astype(seq.dtype)
    return jnp.sum(seq * msk3, axis=1) / jnp.sum(msk3)


# ---------------------------------------------------------------------------
if __name__ == "__main__":
    B, N, D = 2, 8, 32   # batch, nodes (seq len), hidden
    key = jax.random.PRNGKey(0)
    k_seq, k_msk = jax.random.split(key)

    seq = jax.random.normal(k_seq, (B, N, D), jnp.float32)
    msk = (jax.random.uniform(k_msk, (B, N)) < 0.6).astype(jnp.float32)
    msk = msk.at[:, 0].set(1.0)   # guarantee a nonzero global mask sum

    # Masked path
    out_masked = jax.block_until_ready(avg_readout(seq, msk))
    ref_masked = reference_avg_readout(seq, msk)
    np.testing.assert_allclose(np.asarray(out_masked), np.asarray(ref_masked),
                               rtol=1e-5, atol=1e-5)

    # msk=None path
    out_mean = jax.block_until_ready(avg_readout(seq, None))
    ref_mean = reference_avg_readout(seq, None)
    np.testing.assert_allclose(np.asarray(out_mean), np.asarray(ref_mean),
                               rtol=1e-5, atol=1e-5)

    print("KERNEL_OK")
</pallas_src>

<mosaic_0001>
module attributes {stable_mosaic.version = 11 : i64} {
  func.func @_masked_kernel(%arg0: i32, %arg1: i32, %arg2: memref<1x1xf32, #tpu.memory_space<smem>>, %arg3: memref<2x8x32xf32, #tpu.memory_space<vmem>>, %arg4: memref<2x1x8xf32, #tpu.memory_space<vmem>>, %arg5: memref<2x1x32xf32, #tpu.memory_space<vmem>>, %arg6: memref<2x1x32xf32, #tpu.memory_space<vmem>>) attributes {dimension_semantics = [#tpu.dimension_semantics<parallel>, #tpu.dimension_semantics<arbitrary>], iteration_bounds = array<i64: 1, 1>, scalar_prefetch = 0 : i64, scratch_operands = 1 : i64, tpu.core_type = #tpu.core_type<tc>, window_params = [{transform_indices = @transform_0, window_bounds = array<i64: 1, 1>}, {transform_indices = @transform_1, window_bounds = array<i64: 2, 8, 32>}, {transform_indices = @transform_2, window_bounds = array<i64: 2, 1, 8>}, {transform_indices = @transform_3, window_bounds = array<i64: 2, 1, 32>}]} {
    %c0_i32 = arith.constant 0 : i32
    %0 = arith.cmpi eq, %arg1, %c0_i32 : i32
    %1 = arith.extui %0 : i1 to i32
    %c0_i32_0 = arith.constant 0 : i32
    %2 = arith.cmpi ne, %1, %c0_i32_0 : i32
    scf.if %2 {
      %cst_14 = arith.constant 0.000000e+00 : f32
      %12 = vector.broadcast %cst_14 : f32 to vector<2x1x32xf32>
      %c0_15 = arith.constant 0 : index
      %c0_16 = arith.constant 0 : index
      %c0_17 = arith.constant 0 : index
      %13 = vector.load %arg6[%c0_15, %c0_16, %c0_17] : memref<2x1x32xf32, #tpu.memory_space<vmem>>, vector<2x1x32xf32>
      tpu.vector_store %arg6[%c0_15, %c0_16, %c0_17], %12 {strides = array<i32>} : memref<2x1x32xf32, #tpu.memory_space<vmem>>, vector<2x1x32xf32>,
    } else {
    }
    %c0 = arith.constant 0 : index
    %c0_1 = arith.constant 0 : index
    %c0_2 = arith.constant 0 : index
    %3 = vector.load %arg6[%c0, %c0_1, %c0_2] : memref<2x1x32xf32, #tpu.memory_space<vmem>>, vector<2x1x32xf32>
    %c0_3 = arith.constant 0 : index
    %c0_4 = arith.constant 0 : index
    %c0_5 = arith.constant 0 : index
    %4 = vector.load %arg4[%c0_3, %c0_4, %c0_5] : memref<2x1x8xf32, #tpu.memory_space<vmem>>, vector<2x1x8xf32>
    %c0_6 = arith.constant 0 : index
    %c0_7 = arith.constant 0 : index
    %c0_8 = arith.constant 0 : index
    %5 = vector.load %arg3[%c0_6, %c0_7, %c0_8] : memref<2x8x32xf32, #tpu.memory_space<vmem>>, vector<2x8x32xf32>
    "tpu.trace_start"() <{level = 10 : i32, message = "bqn,bnd->bqd"}> : () -> ()
    %cst = arith.constant dense<0.000000e+00> : vector<2x1x32xf32>
    %6 = tpu.matmul %4, %5, %cst {dimension_numbers = #tpu.dot_dimension_numbers<[2], [1], [1], [2], [0, 0, 0, 1, 1, 2], [0], [0]>} : vector<2x1x8xf32>, vector<2x8x32xf32>, vector<2x1x32xf32> -> vector<2x1x32xf32>
    "tpu.trace_stop"() : () -> ()
    %7 = arith.addf %3, %6 : vector<2x1x32xf32>
    %c0_9 = arith.constant 0 : index
    %c0_10 = arith.constant 0 : index
    %c0_11 = arith.constant 0 : index
    %8 = vector.load %arg6[%c0_9, %c0_10, %c0_11] : memref<2x1x32xf32, #tpu.memory_space<vmem>>, vector<2x1x32xf32>
    tpu.vector_store %arg6[%c0_9, %c0_10, %c0_11], %7 {strides = array<i32>} : memref<2x1x32xf32, #tpu.memory_space<vmem>>, vector<2x1x32xf32>,
    %c0_i32_12 = arith.constant 0 : i32
    %9 = arith.cmpi eq, %arg1, %c0_i32_12 : i32
    %10 = arith.extui %9 : i1 to i32
    %c0_i32_13 = arith.constant 0 : i32
    %11 = arith.cmpi ne, %10, %c0_i32_13 : i32
    scf.if %11 {
      %c0_14 = arith.constant 0 : index
      %c0_15 = arith.constant 0 : index
      %c0_16 = arith.constant 0 : index
      %12 = vector.load %arg6[%c0_14, %c0_15, %c0_16] : memref<2x1x32xf32, #tpu.memory_space<vmem>>, vector<2x1x32xf32>
      %c0_17 = arith.constant 0 : index
      %c0_18 = arith.constant 0 : index
      %13 = memref.load %arg2[%c0_17, %c0_18] : memref<1x1xf32, #tpu.memory_space<smem>>
      %14 = vector.broadcast %13 : f32 to vector<2x1x32xf32>
      %15 = arith.mulf %12, %14 : vector<2x1x32xf32>
      %c0_19 = arith.constant 0 : index
      %c0_20 = arith.constant 0 : index
      %c0_21 = arith.constant 0 : index
      %16 = vector.load %arg5[%c0_19, %c0_20, %c0_21] : memref<2x1x32xf32, #tpu.memory_space<vmem>>, vector<2x1x32xf32>
      tpu.vector_store %arg5[%c0_19, %c0_20, %c0_21], %15 {strides = array<i32>} : memref<2x1x32xf32, #tpu.memory_space<vmem>>, vector<2x1x32xf32>,
    } else {
    }
    return
  }
  func.func @transform_0(%arg0: i32, %arg1: i32) -> (i32, i32) {
    %c0_i32 = arith.constant 0 : i32
    %c0_i32_0 = arith.constant 0 : i32
    %c0_i32_1 = arith.constant 0 : i32
    return %c0_i32, %c0_i32_0 : i32, i32
  }
  func.func @transform_1(%arg0: i32, %arg1: i32) -> (i32, i32, i32) {
    %c0_i32 = arith.constant 0 : i32
    %c0_i32_0 = arith.constant 0 : i32
    return %arg0, %arg1, %c0_i32 : i32, i32, i32
  }
  func.func @transform_2(%arg0: i32, %arg1: i32) -> (i32, i32, i32) {
    %c0_i32 = arith.constant 0 : i32
    %c0_i32_0 = arith.constant 0 : i32
    return %arg0, %c0_i32, %arg1 : i32, i32, i32
  }
  func.func @transform_3(%arg0: i32, %arg1: i32) -> (i32, i32, i32) {
    %c0_i32 = arith.constant 0 : i32
    %c0_i32_0 = arith.constant 0 : i32
    %c0_i32_1 = arith.constant 0 : i32
    return %arg0, %c0_i32, %c0_i32_0 : i32, i32, i32
  }
}

</mosaic_0001>

<llo_original>
// kernel: _avg_readout_masked.1
$region0: #{_avg_readout_masked.1}
  #allocation0 [shape = 'u32[]', space=smem, size = 0x4, offset = 0x4, fixed_abs, tag = 'smem constant byte address 0x4 - core index']
  #allocation1 [shape = 'u32[144,128]{1,0:T(1,128)}', space=vmem, size = 0x12000, scoped, tag = 'internal scratch']
  #allocation2 [shape = 'f32[2,1,32]{2,1,0:T(1,128)}', space=vmem, size = 0x400, scoped, tag = 'scratch operand']
  #allocation3 [shape = 'f32[1,1]{1,0:T(1,128)S(6)}', space=smem, size = 0x200, scoped, tag = 'scoped memory for _avg_readout_masked.1']
  %s0 = inlined_call_operand.<no memory space> [shape: f32[1,1], index: 0, kind: input, shape index: {}]
  %s1 = inlined_call_operand.hbm [shape: f32[2,8,32], index: 1, kind: input, shape index: {}]
  %s2 = inlined_call_operand.vmem [shape: f32[2,1,8], index: 2, kind: input, shape index: {}]
  %s3 = inlined_call_operand.hbm [shape: f32[2,1,32], index: 3, kind: output, shape index: {}]
  %s4 = sld [smem:[#allocation0]]
  $region34: #{_avg_readout_masked.1} parent=0
    _
  %s6 = ssub.s32 1, %s4
  %s7 = scalar_select 0, %s6, %s4
  %8 = sst [smem:[#allocation3]] %s0
  $region1: #{_avg_readout_masked.1} parent=0
    #allocation4 [shape = 'u8[8192]{0}', space=vmem, size = 0x2000, scoped, tag = 'input window, operand 1, single buffered']
    #allocation5 [shape = 's32[1]{0}', space=sflag, size = 0x4, scoped, tag = 'scoped memory for _avg_readout_masked.1']
    #allocation6 [shape = 's32[1]{0}', space=sflag, size = 0x4, scoped, tag = 'scoped memory for _avg_readout_masked.1']
    #allocation7 [shape = 'u8[1024]{0}', space=vmem, size = 0x400, scoped, tag = 'output window, operand 0, single buffered']
    %9 = vsyncpa [#allocation5], 0
    %10 = vsyncpa [#allocation6], 0
    // Predicated region
    $region2: #{_avg_readout_masked.1} parent=1 // pred_check
      _
    $region3: #{_avg_readout_masked.1} parent=1 // pred_check_branch
      %12 = sbr.rel (0) target = $region5
    $region4: #{_avg_readout_masked.1} parent=1 // pred_region
      _
    $region5: #{_avg_readout_masked.1} parent=1 // pred_fallthru
      _
    // Predicated region
    $region6: #{_avg_readout_masked.1} parent=1 // pred_check
      _
    $region7: #{_avg_readout_masked.1} parent=1 // pred_check_branch
      %14 = sbr.rel (0) target = $region9
    $region8: #{_avg_readout_masked.1} parent=1 // pred_region
      %s16 = ssub.s32 256, 256
      %17 = vsyncadd [#allocation5], %s16
      %s18 = sshll.u32 [#allocation4], 4
      %s19 = int_to_ptr.vmem [resolvable:$true] %s18
      %24 = dma.hbm_to_vmem [thread:$0]  %s1, 256, %s19, [#allocation5], 128, 128, 8
    $region9: #{_avg_readout_masked.1} parent=1 // pred_fallthru
      _
    // Predicated region
    $region10: #{_avg_readout_masked.1} parent=1 // pred_check
      _
    $region11: #{_avg_readout_masked.1} parent=1 // pred_check_branch
      %26 = sbr.rel (0) target = $region13
    $region12: #{_avg_readout_masked.1} parent=1 // pred_region
      _
    $region13: #{_avg_readout_masked.1} parent=1 // pred_fallthru
      _
    // Predicated region
    $region14: #{_avg_readout_masked.1} parent=1 // pred_check
      _
    $region15: #{_avg_readout_masked.1} parent=1 // pred_check_branch
      %28 = sbr.rel (0) target = $region17
    $region16: #{_avg_readout_masked.1} parent=1 // pred_region
      %29 = dma.done [#allocation5], 256
    $region17: #{_avg_readout_masked.1} parent=1 // pred_fallthru
      _
    %p30 = scmp.eq.s32.totalorder 0, 0
    // Predicated region
    $region18: #{_avg_readout_masked.1} parent=1 // pred_check
      %p31 = pneg %p30
    $region19: #{_avg_readout_masked.1} parent=1 // pred_check_branch
      %33 = sbr.rel (%p31) target = $region21
    $region20: #{_avg_readout_masked.1} parent=1 // pred_region
      %vm34 = vcmask 253952
      %35 = vst.msk [vmem:[#allocation2] sm:$0x1] %vm34, 0.0
      %36 = vst.msk [vmem:[#allocation2 + $0x1] sm:$0x1] %vm34, 0.0
    $region21: #{_avg_readout_masked.1} parent=1 // pred_fallthru
      _
    %v37 = vld [vmem:[#allocation2] sm:$0x1]
    %v38 = vld [vmem:[#allocation2 + $0x1] sm:$0x1]
    %v39 = vld [vmem:[%s2] sm:$0x1]
    %v40 = vld [vmem:[%s2 + $0x1] sm:$0x1]
    %v41 = vld [vmem:[#allocation4] sm:$0xff]
    %v42 = vld [vmem:[#allocation4 + $0x8] sm:$0xff]
    %vm43 = vcmask 64512
    %v45 = vsel %vm43, %v39, 0
    %47 = vmatprep.subr.mxu0 0.0
    %48 = vmatpush1.msra.mxu0 0.0
    %49 = vmatprep.subr.mxu0 0.0
    %50 = vmatpush1.msra.mxu0 0.0
    %51 = vmatprep.subr.mxu0 0.0
    %52 = vmatpush1.msra.mxu0 0.0
    %53 = vmatprep.subr.mxu0 0.0
    %54 = vmatpush1.msra.mxu0 0.0
    %55 = vmatprep.subr.mxu0 0.0
    %56 = vmatpush1.msra.mxu0 0.0
    %57 = vmatprep.subr.mxu0 0.0
    %58 = vmatpush1.msra.mxu0 0.0
    %59 = vmatprep.subr.mxu0 0.0
    %60 = vmatpush1.msra.mxu0 0.0
    %61 = vmatprep.subr.mxu0 0.0
    %62 = vmatpush1.msra.mxu0 0.0
    %63 = vmatprep.subr.mxu0 0.0
    %64 = vmatpush1.msra.mxu0 0.0
    %65 = vmatprep.subr.mxu0 0.0
    %66 = vmatpush1.msra.mxu0 0.0
    %67 = vmatprep.subr.mxu0 0.0
    %68 = vmatpush1.msra.mxu0 0.0
    %69 = vmatprep.subr.mxu0 0.0
    %70 = vmatpush1.msra.mxu0 0.0
    %71 = vmatprep.subr.mxu0 0.0
    %72 = vmatpush1.msra.mxu0 0.0
    %73 = vmatprep.subr.mxu0 0.0
    %74 = vmatpush1.msra.mxu0 0.0
    %75 = vmatprep.subr.mxu0 0.0
    %76 = vmatpush1.msra.mxu0 0.0
    %77 = vmatprep.subr.mxu0 0.0
    %78 = vmatpush1.msra.mxu0 %v41
    %79 = vmatprep.subr.mxu0 0.0
    %80 = vmatpush2.msra.mxu0 0.0
    %81 = vmatprep.subr.mxu0 0.0
    %82 = vmatpush2.msra.mxu0 0.0
    %83 = vmatprep.subr.mxu0 0.0
    %84 = vmatpush2.msra.mxu0 0.0
    %85 = vmatprep.subr.mxu0 0.0
    %86 = vmatpush2.msra.mxu0 0.0
    %87 = vmatprep.subr.mxu0 0.0
    %88 = vmatpush2.msra.mxu0 0.0
    %89 = vmatprep.subr.mxu0 0.0
    %90 = vmatpush2.msra.mxu0 0.0
    %91 = vmatprep.subr.mxu0 0.0
    %92 = vmatpush2.msra.mxu0 0.0
    %93 = vmatprep.subr.mxu0 0.0
    %94 = vmatpush2.msra.mxu0 0.0
    %95 = vmatprep.subr.mxu0 0.0
    %96 = vmatpush2.msra.mxu0 0.0
    %97 = vmatprep.subr.mxu0 0.0
    %98 = vmatpush2.msra.mxu0 0.0
    %99 = vmatprep.subr.mxu0 0.0
    %100 = vmatpush2.msra.mxu0 0.0
    %101 = vmatprep.subr.mxu0 0.0
    %102 = vmatpush2.msra.mxu0 0.0
    %103 = vmatprep.subr.mxu0 0.0
    %104 = vmatpush2.msra.mxu0 0.0
    %105 = vmatprep.subr.mxu0 0.0
    %106 = vmatpush2.msra.mxu0 0.0
    %107 = vmatprep.subr.mxu0 0.0
    %108 = vmatpush2.msra.mxu0 0.0
    %109 = vmatprep.subr.mxu0 0.0
    %110 = vmatpush2.msra.mxu0 0.0
    %111 = vmatprep.mubr.f32.mxu0 0.0
    %112 = vmatmul.mubr.f32.gmra.mxu0 %v45
    %v113 = vpop.f32.mrf.mxu0
    %v114 = vadd.f32 0.0, %v113
    %v115 = vpop.f32.mrf.mxu0
    %116 = vdwg.mxu0
    %v118 = vsel %vm43, %v40, 0
    %120 = vmatprep.subr.mxu0 0.0
    %121 = vmatpush1.msra.mxu0 0.0
    %122 = vmatprep.subr.mxu0 0.0
    %123 = vmatpush1.msra.mxu0 0.0
    %124 = vmatprep.subr.mxu0 0.0
    %125 = vmatpush1.msra.mxu0 0.0
    %126 = vmatprep.subr.mxu0 0.0
    %127 = vmatpush1.msra.mxu0 0.0
    %128 = vmatprep.subr.mxu0 0.0
    %129 = vmatpush1.msra.mxu0 0.0
    %130 = vmatprep.subr.mxu0 0.0
    %131 = vmatpush1.msra.mxu0 0.0
    %132 = vmatprep.subr.mxu0 0.0
    %133 = vmatpush1.msra.mxu0 0.0
    %134 = vmatprep.subr.mxu0 0.0
    %135 = vmatpush1.msra.mxu0 0.0
    %136 = vmatprep.subr.mxu0 0.0
    %137 = vmatpush1.msra.mxu0 0.0
    %138 = vmatprep.subr.mxu0 0.0
    %139 = vmatpush1.msra.mxu0 0.0
    %140 = vmatprep.subr.mxu0 0.0
    %141 = vmatpush1.msra.mxu0 0.0
    %142 = vmatprep.subr.mxu0 0.0
    %143 = vmatpush1.msra.mxu0 0.0
    %144 = vmatprep.subr.mxu0 0.0
    %145 = vmatpush1.msra.mxu0 0.0
    %146 = vmatprep.subr.mxu0 0.0
    %147 = vmatpush1.msra.mxu0 0.0
    %148 = vmatprep.subr.mxu0 0.0
    %149 = vmatpush1.msra.mxu0 0.0
    %150 = vmatprep.subr.mxu0 0.0
    %151 = vmatpush1.msra.mxu0 %v42
    %152 = vmatprep.subr.mxu0 0.0
    %153 = vmatpush2.msra.mxu0 0.0
    %154 = vmatprep.subr.mxu0 0.0
    %155 = vmatpush2.msra.mxu0 0.0
    %156 = vmatprep.subr.mxu0 0.0
    %157 = vmatpush2.msra.mxu0 0.0
    %158 = vmatprep.subr.mxu0 0.0
    %159 = vmatpush2.msra.mxu0 0.0
    %160 = vmatprep.subr.mxu0 0.0
    %161 = vmatpush2.msra.mxu0 0.0
    %162 = vmatprep.subr.mxu0 0.0
    %163 = vmatpush2.msra.mxu0 0.0
    %164 = vmatprep.subr.mxu0 0.0
    %165 = vmatpush2.msra.mxu0 0.0
    %166 = vmatprep.subr.mxu0 0.0
    %167 = vmatpush2.msra.mxu0 0.0
    %168 = vmatprep.subr.mxu0 0.0
    %169 = vmatpush2.msra.mxu0 0.0
    %170 = vmatprep.subr.mxu0 0.0
    %171 = vmatpush2.msra.mxu0 0.0
    %172 = vmatprep.subr.mxu0 0.0
    %173 = vmatpush2.msra.mxu0 0.0
    %174 = vmatprep.subr.mxu0 0.0
    %175 = vmatpush2.msra.mxu0 0.0
    %176 = vmatprep.subr.mxu0 0.0
    %177 = vmatpush2.msra.mxu0 0.0
    %178 = vmatprep.subr.mxu0 0.0
    %179 = vmatpush2.msra.mxu0 0.0
    %180 = vmatprep.subr.mxu0 0.0
    %181 = vmatpush2.msra.mxu0 0.0
    %182 = vmatprep.subr.mxu0 0.0
    %183 = vmatpush2.msra.mxu0 0.0
    %184 = vmatprep.mubr.f32.mxu0 0.0
    %185 = vmatmul.mubr.f32.gmra.mxu0 %v118
    %v186 = vpop.f32.mrf.mxu0
    %v187 = vadd.f32 0.0, %v186
    %v188 = vpop.f32.mrf.mxu0
    %189 = vdwg.mxu0
    %v190 = vadd.f32 %v37, %v114
    %v191 = vadd.f32 %v38, %v187
    %vm192 = vcmask 253952
    %193 = vst.msk [vmem:[#allocation2] sm:$0x1] %vm192, %v190
    %194 = vst.msk [vmem:[#allocation2 + $0x1] sm:$0x1] %vm192, %v191
    // Predicated region
    $region22: #{_avg_readout_masked.1} parent=1 // pred_check
      %p195 = pneg %p30
    $region23: #{_avg_readout_masked.1} parent=1 // pred_check_branch
      %197 = sbr.rel (%p195) target = $region25
    $region24: #{_avg_readout_masked.1} parent=1 // pred_region
      %v198 = vld [vmem:[#allocation2] sm:$0x1]
      %v199 = vld [vmem:[#allocation2 + $0x1] sm:$0x1]
      %s200 = sld [smem:[#allocation3]]
      %v201 = vstv %s200
      %v202 = vmul.f32 %v198, %v201
      %v203 = vmul.f32 %v199, %v201
      %204 = vst.msk [vmem:[#allocation7] sm:$0x1] %vm192, %v202
      %205 = vst.msk [vmem:[#allocation7 + $0x1] sm:$0x1] %vm192, %v203
    $region25: #{_avg_readout_masked.1} parent=1 // pred_fallthru
      _
    // Predicated region
    $region26: #{_avg_readout_masked.1} parent=1 // pred_check
      _
    $region27: #{_avg_readout_masked.1} parent=1 // pred_check_branch
      %207 = sbr.rel (0) target = $region29
    $region28: #{_avg_readout_masked.1} parent=1 // pred_region
      %s209 = ssub.s32 32, 32
      %210 = vsyncadd [#allocation6], %s209
      %s211 = sshll.u32 [#allocation7], 4
      %s212 = int_to_ptr.vmem [resolvable:$true] %s211
      %217 = dma.vmem_to_hbm [thread:$0]  %s212, 32, %s3, [#allocation6], 16, 16, 1
    $region29: #{_avg_readout_masked.1} parent=1 // pred_fallthru
      _
    // Predicated region
    $region30: #{_avg_readout_masked.1} parent=1 // pred_check
      _
    $region31: #{_avg_readout_masked.1} parent=1 // pred_check_branch
      %219 = sbr.rel (0) target = $region33
    $region32: #{_avg_readout_masked.1} parent=1 // pred_region
      %220 = dma.done [#allocation6], 32
    $region33: #{_avg_readout_masked.1} parent=1 // pred_fallthru
      _
    %221 = vsyncpa [#allocation5], 1
    %222 = vsyncpa [#allocation6], 1

</llo_original>
